<compile_context>
chip_gen: v7x
topology: tpu7x:2x2x1
jax: 0.10.0
libtpu: 0.0.40
codegen_flags: <defaults>
</compile_context>

<pallas_src>
import math

import jax
import jax.numpy as jnp
from jax.experimental import pallas as pl
from jax.experimental.pallas import tpu as pltpu


def _round_up(x: int, m: int) -> int:
    return ((x + m - 1) // m) * m


def _make_gcn_kernel(*, theta: float, s: float, variant: bool, useAOR: bool,
                     useDLR: bool, residual: bool, tm: int):
    """Build the fused kernel with the module's static flags / scalars baked in."""
    theta = float(theta)
    s = float(s)
    one_m_s = 1.0 - s
    one_m_theta = 1.0 - theta

    if variant and useAOR:
        # weight is (2*F_in, F_out) pre-split into W1 (top) / W2 (bottom):
        #   concat([hi, h0], 1) @ W == hi @ W1 + h0 @ W2   (concat-free)
        def kernel(adj_ref, x_ref, h0_ref, w1_ref, w2_ref, out_ref):
            # hi = spmm(adj, input) -- adjacency materialized as a dense matmul
            # TODO(synk): torch.spmm takes a sparse adjacency; no in-kernel
            #             sparse format, so the adjacency is handled dense.
            hi = jnp.dot(adj_ref[...], x_ref[...],
                         preferred_element_type=jnp.float32)
            h0 = h0_ref[...]
            sw = (jnp.dot(hi.astype(w1_ref.dtype), w1_ref[...],
                          preferred_element_type=jnp.float32)
                  + jnp.dot(h0, w2_ref[...],
                            preferred_element_type=jnp.float32))
            r = one_m_s * hi + s * h0.astype(jnp.float32)
            if useDLR:
                out = theta * sw + one_m_theta * r
            else:
                out = sw
            if residual:
                row = pl.multiple_of(pl.program_id(0) * tm, tm)
                out = out + x_ref[pl.ds(row, tm), :].astype(jnp.float32)
            out_ref[...] = out.astype(out_ref.dtype)
    else:
        def kernel(adj_ref, x_ref, h0_ref, w_ref, out_ref):
            hi = jnp.dot(adj_ref[...], x_ref[...],
                         preferred_element_type=jnp.float32)
            if useAOR:
                support = one_m_s * hi + s * h0_ref[...].astype(jnp.float32)
            else:
                support = hi
            r = support
            sw = jnp.dot(support.astype(w_ref.dtype), w_ref[...],
                         preferred_element_type=jnp.float32)
            if useDLR:
                out = theta * sw + one_m_theta * r
            else:
                out = sw
            if residual:
                row = pl.multiple_of(pl.program_id(0) * tm, tm)
                out = out + x_ref[pl.ds(row, tm), :].astype(jnp.float32)
            out_ref[...] = out.astype(out_ref.dtype)

    return kernel


def graph_convolution(inp, adj, h0, weight, lamda, s, l, *,
                      variant=False, useAOR=True, useDLR=True, residual=False,
                      tm=256):
    """Pallas forward pass matching GraphConvolution.forward semantics."""
    n, f_in = inp.shape
    f_out = weight.shape[1]
    itemsize = jnp.dtype(inp.dtype).itemsize

    if variant:
        assert useAOR, "variant=True with useAOR=False is inconsistent in the original module"
        assert weight.shape[0] == 2 * f_in, "variant weight must be (2*F_in, F_out)"
    else:
        assert weight.shape[0] == f_in, "weight must be (F_in, F_out)"
    if useDLR or residual:
        assert f_in == f_out, "DLR blend / residual require in_features == out_features"

    theta = float(lamda) / float(l)

    # --- lane-dense feature padding (multiples of 128) and row tiling ---------
    f_in_p = _round_up(f_in, 128)
    f_out_p = _round_up(f_out, 128)
    tm = min(int(tm), _round_up(n, 8))         # row tile, multiple of 8
    n_p = _round_up(n, tm)

    def pad2(a, rows, cols):
        return jnp.pad(a, ((0, rows - a.shape[0]), (0, cols - a.shape[1])))

    adj_p = pad2(adj, n_p, n_p)
    x_p = pad2(inp, n_p, f_in_p)
    h0_p = pad2(h0, n_p, f_in_p)

    kernel = _make_gcn_kernel(theta=theta, s=float(s), variant=variant,
                              useAOR=useAOR, useDLR=useDLR, residual=residual,
                              tm=tm)

    grid = (n_p // tm,)
    in_specs = [
        pl.BlockSpec((tm, n_p), lambda i: (i, 0)),       # adj: row tile (pipelined)
        pl.BlockSpec((n_p, f_in_p), lambda i: (0, 0)),   # x:   fully resident
        pl.BlockSpec((tm, f_in_p), lambda i: (i, 0)),    # h0:  row tile
    ]
    w_spec = pl.BlockSpec((f_in_p, f_out_p), lambda i: (0, 0))

    if variant:
        w1_p = pad2(weight[:f_in], f_in_p, f_out_p)
        w2_p = pad2(weight[f_in:], f_in_p, f_out_p)
        operands = (adj_p, x_p, h0_p, w1_p, w2_p)
        in_specs = in_specs + [w_spec, w_spec]
        w_flops = 4 * n_p * f_in_p * f_out_p
        w_bytes = 2 * f_in_p * f_out_p * jnp.dtype(weight.dtype).itemsize
    else:
        w_p = pad2(weight, f_in_p, f_out_p)
        operands = (adj_p, x_p, h0_p, w_p)
        in_specs = in_specs + [w_spec]
        w_flops = 2 * n_p * f_in_p * f_out_p
        w_bytes = f_in_p * f_out_p * jnp.dtype(weight.dtype).itemsize

    cost = pl.CostEstimate(
        flops=2 * n_p * n_p * f_in_p + w_flops,
        transcendentals=0,
        bytes_accessed=(n_p * n_p + 2 * n_p * f_in_p + n_p * f_out_p) * itemsize + w_bytes,
    )

    # Scoped-VMEM hint: double-buffered adj/out tiles + resident x/h0/weight.
    vmem_needed = (2 * tm * n_p + 2 * n_p * f_in_p + 2 * tm * f_in_p
                   + 4 * f_in_p * f_out_p + 2 * tm * f_out_p) * itemsize
    vmem_limit = int(min(max(vmem_needed + (4 << 20), 32 << 20), 100 << 20))

    out_p = pl.pallas_call(
        kernel,
        out_shape=jax.ShapeDtypeStruct((n_p, f_out_p), inp.dtype),
        grid=grid,
        in_specs=in_specs,
        out_specs=pl.BlockSpec((tm, f_out_p), lambda i: (i, 0)),
        compiler_params=pltpu.CompilerParams(
            dimension_semantics=("parallel",),
            vmem_limit_bytes=vmem_limit),
        cost_estimate=cost,
    )(*operands)

    return out_p[:n, :f_out]


def _reference(inp, adj, h0, weight, lamda, s, l, *,
               variant=False, useAOR=True, useDLR=True, residual=False):
    """Pure-JAX reference mirroring the PyTorch forward."""
    theta = lamda / l
    hi = adj @ inp
    if not useAOR:
        support = hi
        r = support
    elif variant:
        support = jnp.concatenate([hi, h0], axis=1)
        r = (1 - s) * hi + s * h0
    else:
        support = (1 - s) * hi + s * h0
        r = support
    if useDLR:
        out = theta * (support @ weight) + (1 - theta) * r
    else:
        out = support @ weight
    if residual:
        out = out + inp
    return out


if __name__ == "__main__":
    key = jax.random.PRNGKey(0)
    lamda, s, l = 0.5, 0.3, 2.0   # e.g. layer index l=2 in the original model's loop

    def make_inputs(k, n, f_in, f_out, variant):
        k_adj, k_x, k_h0, k_w = jax.random.split(k, 4)
        adj_raw = jax.random.uniform(k_adj, (n, n), dtype=jnp.float32)
        adj = adj_raw / jnp.sum(adj_raw, axis=1, keepdims=True)  # row-normalized
        x = jax.random.normal(k_x, (n, f_in), dtype=jnp.float32)
        h0 = jax.random.normal(k_h0, (n, f_in), dtype=jnp.float32)
        w_rows = 2 * f_in if variant else f_in
        stdv = 1.0 / math.sqrt(f_out)                 # reset_parameters()
        w = jax.random.uniform(k_w, (w_rows, f_out), dtype=jnp.float32,
                               minval=-stdv, maxval=stdv)
        return adj, x, h0, w

    configs = [
        dict(n=64, f=32, variant=False, useAOR=True,  useDLR=True,  residual=False),
        dict(n=64, f=32, variant=False, useAOR=True,  useDLR=True,  residual=True),
        dict(n=64, f=32, variant=True,  useAOR=True,  useDLR=True,  residual=False),
        dict(n=64, f=32, variant=False, useAOR=False, useDLR=True,  residual=False),
        dict(n=50, f=32, variant=False, useAOR=True,  useDLR=False, residual=False),  # row padding
    ]

    for i, cfg in enumerate(configs):
        sub = jax.random.fold_in(key, i)
        adj, x, h0, w = make_inputs(sub, cfg["n"], cfg["f"], cfg["f"], cfg["variant"])
        out = graph_convolution(x, adj, h0, w, lamda, s, l,
                                variant=cfg["variant"], useAOR=cfg["useAOR"],
                                useDLR=cfg["useDLR"], residual=cfg["residual"])
        out = jax.block_until_ready(out)
        ref = _reference(x, adj, h0, w, lamda, s, l,
                         variant=cfg["variant"], useAOR=cfg["useAOR"],
                         useDLR=cfg["useDLR"], residual=cfg["residual"])
        assert out.shape == ref.shape, f"shape mismatch for cfg {cfg}"
        assert jnp.allclose(out, ref, atol=1e-4, rtol=1e-4), f"mismatch vs reference, cfg {cfg}"

    # bf16 smoke test: inputs fed to the MXU natively (no in-kernel f32 upcast).
    adj, x, h0, w = make_inputs(jax.random.fold_in(key, 99), 64, 32, 32, False)
    out_bf16 = graph_convolution(x.astype(jnp.bfloat16), adj.astype(jnp.bfloat16),
                                 h0.astype(jnp.bfloat16), w.astype(jnp.bfloat16),
                                 lamda, s, l)
    out_bf16 = jax.block_until_ready(out_bf16)
    assert out_bf16.shape == (64, 32)
    assert bool(jnp.all(jnp.isfinite(out_bf16.astype(jnp.float32))))

    print("KERNEL_OK")
</pallas_src>

<mosaic_0001>
module attributes {stable_mosaic.version = 11 : i64} {
  func.func @kernel(%arg0: i32, %arg1: memref<64x64xf32, #tpu.memory_space<vmem>>, %arg2: memref<64x128xf32, #tpu.memory_space<vmem>>, %arg3: memref<64x128xf32, #tpu.memory_space<vmem>>, %arg4: memref<128x128xf32, #tpu.memory_space<vmem>>, %arg5: memref<64x128xf32, #tpu.memory_space<vmem>>) attributes {dimension_semantics = [#tpu.dimension_semantics<parallel>], iteration_bounds = array<i64: 1>, scalar_prefetch = 0 : i64, scratch_operands = 0 : i64, tpu.core_type = #tpu.core_type<tc>, window_params = [{transform_indices = @transform_0, window_bounds = array<i64: 64, 64>}, {pipeline_mode = #tpu.pipeline_mode<synchronous>, transform_indices = @transform_1, window_bounds = array<i64: 64, 128>}, {transform_indices = @transform_2, window_bounds = array<i64: 64, 128>}, {pipeline_mode = #tpu.pipeline_mode<synchronous>, transform_indices = @transform_3, window_bounds = array<i64: 128, 128>}, {transform_indices = @transform_4, window_bounds = array<i64: 64, 128>}]} {
    %c0 = arith.constant 0 : index
    %c0_0 = arith.constant 0 : index
    %0 = vector.load %arg1[%c0, %c0_0] : memref<64x64xf32, #tpu.memory_space<vmem>>, vector<64x64xf32>
    %c0_1 = arith.constant 0 : index
    %c0_2 = arith.constant 0 : index
    %1 = vector.load %arg2[%c0_1, %c0_2] : memref<64x128xf32, #tpu.memory_space<vmem>>, vector<64x128xf32>
    %cst = arith.constant dense<0.000000e+00> : vector<64x128xf32>
    %2 = tpu.matmul %0, %1, %cst {dimension_numbers = #tpu.dot_dimension_numbers<[1], [0], [0], [1], [0, 0, 1, 1], [], []>} : vector<64x64xf32>, vector<64x128xf32>, vector<64x128xf32> -> vector<64x128xf32>
    %cst_3 = arith.constant 0.699999988 : f32
    %3 = vector.broadcast %cst_3 : f32 to vector<64x128xf32>
    %4 = arith.mulf %3, %2 : vector<64x128xf32>
    %c0_4 = arith.constant 0 : index
    %c0_5 = arith.constant 0 : index
    %5 = vector.load %arg3[%c0_4, %c0_5] : memref<64x128xf32, #tpu.memory_space<vmem>>, vector<64x128xf32>
    %cst_6 = arith.constant 3.000000e-01 : f32
    %6 = vector.broadcast %cst_6 : f32 to vector<64x128xf32>
    %7 = arith.mulf %6, %5 : vector<64x128xf32>
    %8 = arith.addf %4, %7 : vector<64x128xf32>
    %c0_7 = arith.constant 0 : index
    %c0_8 = arith.constant 0 : index
    %9 = vector.load %arg4[%c0_7, %c0_8] : memref<128x128xf32, #tpu.memory_space<vmem>>, vector<128x128xf32>
    %cst_9 = arith.constant dense<0.000000e+00> : vector<64x128xf32>
    %10 = tpu.matmul %8, %9, %cst_9 {dimension_numbers = #tpu.dot_dimension_numbers<[1], [0], [0], [1], [0, 0, 1, 1], [], []>} : vector<64x128xf32>, vector<128x128xf32>, vector<64x128xf32> -> vector<64x128xf32>
    %cst_10 = arith.constant 2.500000e-01 : f32
    %11 = vector.broadcast %cst_10 : f32 to vector<64x128xf32>
    %12 = arith.mulf %11, %10 : vector<64x128xf32>
    %cst_11 = arith.constant 7.500000e-01 : f32
    %13 = vector.broadcast %cst_11 : f32 to vector<64x128xf32>
    %14 = arith.mulf %13, %8 : vector<64x128xf32>
    %15 = arith.addf %12, %14 : vector<64x128xf32>
    %c0_12 = arith.constant 0 : index
    %c0_13 = arith.constant 0 : index
    %16 = vector.load %arg5[%c0_12, %c0_13] : memref<64x128xf32, #tpu.memory_space<vmem>>, vector<64x128xf32>
    tpu.vector_store %arg5[%c0_12, %c0_13], %15 {strides = array<i32>} : memref<64x128xf32, #tpu.memory_space<vmem>>, vector<64x128xf32>,
    return
  }
  func.func @transform_0(%arg0: i32) -> (i32, i32) {
    %c0_i32 = arith.constant 0 : i32
    %c0_i32_0 = arith.constant 0 : i32
    return %arg0, %c0_i32 : i32, i32
  }
  func.func @transform_1(%arg0: i32) -> (i32, i32) {
    %c0_i32 = arith.constant 0 : i32
    %c0_i32_0 = arith.constant 0 : i32
    %c0_i32_1 = arith.constant 0 : i32
    return %c0_i32, %c0_i32_0 : i32, i32
  }
  func.func @transform_2(%arg0: i32) -> (i32, i32) {
    %c0_i32 = arith.constant 0 : i32
    %c0_i32_0 = arith.constant 0 : i32
    return %arg0, %c0_i32 : i32, i32
  }
  func.func @transform_3(%arg0: i32) -> (i32, i32) {
    %c0_i32 = arith.constant 0 : i32
    %c0_i32_0 = arith.constant 0 : i32
    %c0_i32_1 = arith.constant 0 : i32
    return %c0_i32, %c0_i32_0 : i32, i32
  }
  func.func @transform_4(%arg0: i32) -> (i32, i32) {
    %c0_i32 = arith.constant 0 : i32
    %c0_i32_0 = arith.constant 0 : i32
    return %arg0, %c0_i32 : i32, i32
  }
}

</mosaic_0001>

<llo_original>
// kernel: tpu_custom_call.1
$region0: #{tpu_custom_call.1}
  #allocation0 [shape = 'u32[]', space=smem, size = 0x4, offset = 0x4, fixed_abs, tag = 'smem constant byte address 0x4 - core index']
  #allocation1 [shape = 'u32[144,128]{1,0:T(1,128)}', space=vmem, size = 0x12000, scoped, tag = 'internal scratch']
  %s0 = inlined_call_operand.hbm [shape: f32[64,64], index: 0, kind: input, shape index: {}]
  %s1 = inlined_call_operand.hbm [shape: f32[64,128], index: 1, kind: input, shape index: {}]
  %s2 = inlined_call_operand.hbm [shape: f32[64,128], index: 2, kind: input, shape index: {}]
  %s3 = inlined_call_operand.hbm [shape: f32[128,128], index: 3, kind: input, shape index: {}]
  %s4 = inlined_call_operand.hbm [shape: f32[64,128], index: 4, kind: output, shape index: {}]
  %s5 = sld [smem:[#allocation0]]
  $region42: #{tpu_custom_call.1} parent=0
    _
  %s7 = ssub.s32 1, %s5
  %s8 = scalar_select 0, %s7, %s5
  $region1: #{tpu_custom_call.1} parent=0
    #allocation2 [shape = 'u8[32768]{0}', space=vmem, size = 0x8000, scoped, tag = 'input window, operand 0, single buffered']
    #allocation3 [shape = 's32[1]{0}', space=sflag, size = 0x4, scoped, tag = 'scoped memory for tpu_custom_call.1']
    #allocation4 [shape = 's32[1]{0}', space=sflag, size = 0x4, scoped, tag = 'scoped memory for tpu_custom_call.1']
    #allocation5 [shape = 'u8[32768]{0}', space=vmem, size = 0x8000, scoped, tag = 'input window, operand 1, single buffered']
    #allocation6 [shape = 's32[1]{0}', space=sflag, size = 0x4, scoped, tag = 'scoped memory for tpu_custom_call.1']
    #allocation7 [shape = 'u8[32768]{0}', space=vmem, size = 0x8000, scoped, tag = 'input window, operand 2, single buffered']
    #allocation8 [shape = 'u8[65536]{0}', space=vmem, size = 0x10000, scoped, tag = 'input window, operand 3, single buffered']
    #allocation9 [shape = 's32[1]{0}', space=sflag, size = 0x4, scoped, tag = 'scoped memory for tpu_custom_call.1']
    #allocation10 [shape = 'u8[32768]{0}', space=vmem, size = 0x8000, scoped, tag = 'output window, operand 0, single buffered']
    %9 = vsyncpa [#allocation3], 0
    %10 = vsyncpa [#allocation6], 0
    %11 = vsyncpa [#allocation9], 0
    %12 = vsyncpa [#allocation4], 0
    // Predicated region
    $region2: #{tpu_custom_call.1} parent=1 // pred_check
      _
    $region3: #{tpu_custom_call.1} parent=1 // pred_check_branch
      %14 = sbr.rel (0) target = $region5
    $region4: #{tpu_custom_call.1} parent=1 // pred_region
      %s16 = ssub.s32 1024, 1024
      %17 = vsyncadd [#allocation3], %s16
      %s18 = sshll.u32 [#allocation2], 4
      %s19 = int_to_ptr.vmem [resolvable:$true] %s18
      %24 = dma.hbm_to_vmem [thread:$0]  %s0, 1024, %s19, [#allocation3], 128, 128, 8
    $region5: #{tpu_custom_call.1} parent=1 // pred_fallthru
      _
    // Predicated region
    $region6: #{tpu_custom_call.1} parent=1 // pred_check
      _
    $region7: #{tpu_custom_call.1} parent=1 // pred_check_branch
      %26 = sbr.rel (0) target = $region9
    $region8: #{tpu_custom_call.1} parent=1 // pred_region
      %s28 = ssub.s32 1024, 1024
      %29 = vsyncadd [#allocation6], %s28
      %s30 = sshll.u32 [#allocation5], 4
      %s31 = int_to_ptr.vmem [resolvable:$true] %s30
      %36 = dma.hbm_to_vmem [thread:$0]  %s1, 1024, %s31, [#allocation6], 128, 128, 8
    $region9: #{tpu_custom_call.1} parent=1 // pred_fallthru
      _
    // Predicated region
    $region10: #{tpu_custom_call.1} parent=1 // pred_check
      _
    $region11: #{tpu_custom_call.1} parent=1 // pred_check_branch
      %38 = sbr.rel (0) target = $region13
    $region12: #{tpu_custom_call.1} parent=1 // pred_region
      %s40 = ssub.s32 1024, 1024
      %41 = vsyncadd [#allocation6], %s40
      %s42 = sshll.u32 [#allocation7], 4
      %s43 = int_to_ptr.vmem [resolvable:$true] %s42
      %48 = dma.hbm_to_vmem [thread:$0]  %s2, 1024, %s43, [#allocation6], 128, 128, 8
    $region13: #{tpu_custom_call.1} parent=1 // pred_fallthru
      _
    // Predicated region
    $region14: #{tpu_custom_call.1} parent=1 // pred_check
      _
    $region15: #{tpu_custom_call.1} parent=1 // pred_check_branch
      %50 = sbr.rel (0) target = $region17
    $region16: #{tpu_custom_call.1} parent=1 // pred_region
      %s52 = ssub.s32 2048, 2048
      %53 = vsyncadd [#allocation9], %s52
      %s54 = sshll.u32 [#allocation8], 4
      %s55 = int_to_ptr.vmem [resolvable:$true] %s54
      %60 = dma.hbm_to_vmem [thread:$0]  %s3, 2048, %s55, [#allocation9], 128, 128, 8
    $region17: #{tpu_custom_call.1} parent=1 // pred_fallthru
      _
    // Predicated region
    $region18: #{tpu_custom_call.1} parent=1 // pred_check
      _
    $region19: #{tpu_custom_call.1} parent=1 // pred_check_branch
      %62 = sbr.rel (0) target = $region21
    $region20: #{tpu_custom_call.1} parent=1 // pred_region
      %63 = dma.done [#allocation3], 1024
    $region21: #{tpu_custom_call.1} parent=1 // pred_fallthru
      _
    // Predicated region
    $region22: #{tpu_custom_call.1} parent=1 // pred_check
      _
    $region23: #{tpu_custom_call.1} parent=1 // pred_check_branch
      %65 = sbr.rel (0) target = $region25
    $region24: #{tpu_custom_call.1} parent=1 // pred_region
      %66 = dma.done [#allocation6], 1024
    $region25: #{tpu_custom_call.1} parent=1 // pred_fallthru
      _
    // Predicated region
    $region26: #{tpu_custom_call.1} parent=1 // pred_check
      _
    $region27: #{tpu_custom_call.1} parent=1 // pred_check_branch
      %68 = sbr.rel (0) target = $region29
    $region28: #{tpu_custom_call.1} parent=1 // pred_region
      %69 = dma.done [#allocation6], 1024
    $region29: #{tpu_custom_call.1} parent=1 // pred_fallthru
      _
    // Predicated region
    $region30: #{tpu_custom_call.1} parent=1 // pred_check
      _
    $region31: #{tpu_custom_call.1} parent=1 // pred_check_branch
      %71 = sbr.rel (0) target = $region33
    $region32: #{tpu_custom_call.1} parent=1 // pred_region
      %72 = dma.done [#allocation9], 2048
    $region33: #{tpu_custom_call.1} parent=1 // pred_fallthru
      _
    %v73 = vld [vmem:[#allocation2] sm:$0xff]
    %v74 = vld [vmem:[#allocation2 + $0x8] sm:$0xff]
    %v75 = vld [vmem:[#allocation2 + $0x10] sm:$0xff]
    %v76 = vld [vmem:[#allocation2 + $0x18] sm:$0xff]
    %v77 = vld [vmem:[#allocation2 + $0x20] sm:$0xff]
    %v78 = vld [vmem:[#allocation2 + $0x28] sm:$0xff]
    %v79 = vld [vmem:[#allocation2 + $0x30] sm:$0xff]
    %v80 = vld [vmem:[#allocation2 + $0x38] sm:$0xff]
    %v81 = vld [vmem:[#allocation5] sm:$0xff]
    %v82 = vld [vmem:[#allocation5 + $0x8] sm:$0xff]
    %v83 = vld [vmem:[#allocation5 + $0x10] sm:$0xff]
    %v84 = vld [vmem:[#allocation5 + $0x18] sm:$0xff]
    %v85 = vld [vmem:[#allocation5 + $0x20] sm:$0xff]
    %v86 = vld [vmem:[#allocation5 + $0x28] sm:$0xff]
    %v87 = vld [vmem:[#allocation5 + $0x30] sm:$0xff]
    %v88 = vld [vmem:[#allocation5 + $0x38] sm:$0xff]
    %vm89 = vcmask 523264
    %v91 = vsel %vm89, %v73, 0
    %v94 = vsel %vm89, %v74, 0
    %v97 = vsel %vm89, %v75, 0
    %v100 = vsel %vm89, %v76, 0
    %v103 = vsel %vm89, %v77, 0
    %v106 = vsel %vm89, %v78, 0
    %v109 = vsel %vm89, %v79, 0
    %v112 = vsel %vm89, %v80, 0
    %114 = vmatprep.subr.mxu0 0.0
    %115 = vmatpush1.msra.mxu0 %v81
    %116 = vmatprep.subr.mxu0 0.0
    %117 = vmatpush1.msra.mxu0 %v82
    %118 = vmatprep.subr.mxu0 0.0
    %119 = vmatpush1.msra.mxu0 %v83
    %120 = vmatprep.subr.mxu0 0.0
    %121 = vmatpush1.msra.mxu0 %v84
    %122 = vmatprep.subr.mxu0 0.0
    %123 = vmatpush1.msra.mxu0 %v85
    %124 = vmatprep.subr.mxu0 0.0
    %125 = vmatpush1.msra.mxu0 %v86
    %126 = vmatprep.subr.mxu0 0.0
    %127 = vmatpush1.msra.mxu0 %v87
    %128 = vmatprep.subr.mxu0 0.0
    %129 = vmatpush1.msra.mxu0 %v88
    %130 = vmatprep.subr.mxu0 0.0
    %131 = vmatpush1.msra.mxu0 0.0
    %132 = vmatprep.subr.mxu0 0.0
    %133 = vmatpush1.msra.mxu0 0.0
    %134 = vmatprep.subr.mxu0 0.0
    %135 = vmatpush1.msra.mxu0 0.0
    %136 = vmatprep.subr.mxu0 0.0
    %137 = vmatpush1.msra.mxu0 0.0
    %138 = vmatprep.subr.mxu0 0.0
    %139 = vmatpush1.msra.mxu0 0.0
    %140 = vmatprep.subr.mxu0 0.0
    %141 = vmatpush1.msra.mxu0 0.0
    %142 = vmatprep.subr.mxu0 0.0
    %143 = vmatpush1.msra.mxu0 0.0
    %144 = vmatprep.subr.mxu0 0.0
    %145 = vmatpush1.msra.mxu0 0.0
    %146 = vmatprep.subr.mxu0 0.0
    %147 = vmatpush1.msra.mxu0 0.0
    %148 = vmatprep.subr.mxu0 0.0
    %149 = vmatpush1.msra.mxu0 0.0
    %150 = vmatprep.subr.mxu0 0.0
    %151 = vmatpush1.msra.mxu0 0.0
    %152 = vmatprep.subr.mxu0 0.0
    %153 = vmatpush1.msra.mxu0 0.0
    %154 = vmatprep.subr.mxu0 0.0
    %155 = vmatpush1.msra.mxu0 0.0
    %156 = vmatprep.subr.mxu0 0.0
    %157 = vmatpush1.msra.mxu0 0.0
    %158 = vmatprep.subr.mxu0 0.0
    %159 = vmatpush1.msra.mxu0 0.0
    %160 = vmatprep.subr.mxu0 0.0
    %161 = vmatpush1.msra.mxu0 0.0
    %162 = vmatprep.subr.mxu0 0.0
    %163 = vmatpush1.msra.mxu0 0.0
    %164 = vmatprep.subr.mxu0 0.0
    %165 = vmatpush1.msra.mxu0 0.0
    %166 = vmatprep.subr.mxu0 0.0
    %167 = vmatpush1.msra.mxu0 0.0
    %168 = vmatprep.subr.mxu0 0.0
    %169 = vmatpush1.msra.mxu0 0.0
    %170 = vmatprep.subr.mxu0 0.0
    %171 = vmatpush1.msra.mxu0 0.0
    %172 = vmatprep.subr.mxu0 0.0
    %173 = vmatpush1.msra.mxu0 0.0
    %174 = vmatprep.subr.mxu0 0.0
    %175 = vmatpush1.msra.mxu0 0.0
    %176 = vmatprep.subr.mxu0 0.0
    %177 = vmatpush1.msra.mxu0 0.0
    %178 = vmatprep.mubr.f32.mxu0 0.0
    %179 = vmatmul.mubr.f32.gmra.mrb[0].mxu0 %v91
    %v180 = vpop.f32.mrb[0].mxu0
    %v181 = vadd.f32 0.0, %v180
    %v182 = vpop.f32.mrb[0].mxu0
    %183 = vmatprep.mubr.f32.mxu0 0.0
    %184 = vmatmul.mubr.f32.gmra.mrb[0].mxu0 %v94
    %v185 = vpop.f32.mrb[0].mxu0
    %v186 = vadd.f32 0.0, %v185
    %v187 = vpop.f32.mrb[0].mxu0
    %188 = vmatprep.mubr.f32.mxu0 0.0
    %189 = vmatmul.mubr.f32.gmra.mrb[0].mxu0 %v97
    %v190 = vpop.f32.mrb[0].mxu0
    %v191 = vadd.f32 0.0, %v190
    %v192 = vpop.f32.mrb[0].mxu0
    %193 = vmatprep.mubr.f32.mxu0 0.0
    %194 = vmatmul.mubr.f32.gmra.mrb[0].mxu0 %v100
    %v195 = vpop.f32.mrb[0].mxu0
    %v196 = vadd.f32 0.0, %v195
    %v197 = vpop.f32.mrb[0].mxu0
    %198 = vmatprep.mubr.f32.mxu0 0.0
    %199 = vmatmul.mubr.f32.gmra.mrb[0].mxu0 %v103
    %v200 = vpop.f32.mrb[0].mxu0
    %v201 = vadd.f32 0.0, %v200
    %v202 = vpop.f32.mrb[0].mxu0
    %203 = vmatprep.mubr.f32.mxu0 0.0
    %204 = vmatmul.mubr.f32.gmra.mrb[0].mxu0 %v106
    %v205 = vpop.f32.mrb[0].mxu0
    %v206 = vadd.f32 0.0, %v205
    %v207 = vpop.f32.mrb[0].mxu0
    %208 = vmatprep.mubr.f32.mxu0 0.0
    %209 = vmatmul.mubr.f32.gmra.mrb[0].mxu0 %v109
    %v210 = vpop.f32.mrb[0].mxu0
    %v211 = vadd.f32 0.0, %v210
    %v212 = vpop.f32.mrb[0].mxu0
    %213 = vmatprep.mubr.f32.mxu0 0.0
    %214 = vmatmul.mubr.f32.gmra.mrb[0].mxu0 %v112
    %v215 = vpop.f32.mrb[0].mxu0
    %v216 = vadd.f32 0.0, %v215
    %v217 = vpop.f32.mrb[0].mxu0
    %218 = vdwg.mxu0
    %v219 = vmul.f32 %v181, 0.7
    %v220 = vmul.f32 %v186, 0.7
    %v221 = vmul.f32 %v191, 0.7
    %v222 = vmul.f32 %v196, 0.7
    %v223 = vmul.f32 %v201, 0.7
    %v224 = vmul.f32 %v206, 0.7
    %v225 = vmul.f32 %v211, 0.7
    %v226 = vmul.f32 %v216, 0.7
    %v227 = vld [vmem:[#allocation7] sm:$0xff]
    %v228 = vld [vmem:[#allocation7 + $0x8] sm:$0xff]
    %v229 = vld [vmem:[#allocation7 + $0x10] sm:$0xff]
    %v230 = vld [vmem:[#allocation7 + $0x18] sm:$0xff]
    %v231 = vld [vmem:[#allocation7 + $0x20] sm:$0xff]
    %v232 = vld [vmem:[#allocation7 + $0x28] sm:$0xff]
    %v233 = vld [vmem:[#allocation7 + $0x30] sm:$0xff]
    %v234 = vld [vmem:[#allocation7 + $0x38] sm:$0xff]
    %v235 = vmul.f32 %v227, 0.3
    %v236 = vmul.f32 %v228, 0.3
    %v237 = vmul.f32 %v229, 0.3
    %v238 = vmul.f32 %v230, 0.3
    %v239 = vmul.f32 %v231, 0.3
    %v240 = vmul.f32 %v232, 0.3
    %v241 = vmul.f32 %v233, 0.3
    %v242 = vmul.f32 %v234, 0.3
    %v243 = vadd.f32 %v219, %v235
    %v244 = vadd.f32 %v220, %v236
    %v245 = vadd.f32 %v221, %v237
    %v246 = vadd.f32 %v222, %v238
    %v247 = vadd.f32 %v223, %v239
    %v248 = vadd.f32 %v224, %v240
    %v249 = vadd.f32 %v225, %v241
    %v250 = vadd.f32 %v226, %v242
    %v251 = vld [vmem:[#allocation8] sm:$0xff]
    %v252 = vld [vmem:[#allocation8 + $0x8] sm:$0xff]
    %v253 = vld [vmem:[#allocation8 + $0x10] sm:$0xff]
    %v254 = vld [vmem:[#allocation8 + $0x18] sm:$0xff]
    %v255 = vld [vmem:[#allocation8 + $0x20] sm:$0xff]
    %v256 = vld [vmem:[#allocation8 + $0x28] sm:$0xff]
    %v257 = vld [vmem:[#allocation8 + $0x30] sm:$0xff]
    %v258 = vld [vmem:[#allocation8 + $0x38] sm:$0xff]
    %v259 = vld [vmem:[#allocation8 + $0x40] sm:$0xff]
    %v260 = vld [vmem:[#allocation8 + $0x48] sm:$0xff]
    %v261 = vld [vmem:[#allocation8 + $0x50] sm:$0xff]
    %v262 = vld [vmem:[#allocation8 + $0x58] sm:$0xff]
    %v263 = vld [vmem:[#allocation8 + $0x60] sm:$0xff]
    %v264 = vld [vmem:[#allocation8 + $0x68] sm:$0xff]
    %v265 = vld [vmem:[#allocation8 + $0x70] sm:$0xff]
    %v266 = vld [vmem:[#allocation8 + $0x78] sm:$0xff]
    %267 = vmatprep.subr.mxu0 0.0
    %268 = vmatpush1.msra.mxu0 %v251
    %269 = vmatprep.subr.mxu0 0.0
    %270 = vmatpush1.msra.mxu0 %v252
    %271 = vmatprep.subr.mxu0 0.0
    %272 = vmatpush1.msra.mxu0 %v253
    %273 = vmatprep.subr.mxu0 0.0
    %274 = vmatpush1.msra.mxu0 %v254
    %275 = vmatprep.subr.mxu0 0.0
    %276 = vmatpush1.msra.mxu0 %v255
    %277 = vmatprep.subr.mxu0 0.0
    %278 = vmatpush1.msra.mxu0 %v256
    %279 = vmatprep.subr.mxu0 0.0
    %280 = vmatpush1.msra.mxu0 %v257
    %281 = vmatprep.subr.mxu0 0.0
    %282 = vmatpush1.msra.mxu0 %v258
    %283 = vmatprep.subr.mxu0 0.0
    %284 = vmatpush1.msra.mxu0 %v259
    %285 = vmatprep.subr.mxu0 0.0
    %286 = vmatpush1.msra.mxu0 %v260
    %287 = vmatprep.subr.mxu0 0.0
    %288 = vmatpush1.msra.mxu0 %v261
    %289 = vmatprep.subr.mxu0 0.0
    %290 = vmatpush1.msra.mxu0 %v262
    %291 = vmatprep.subr.mxu0 0.0
    %292 = vmatpush1.msra.mxu0 %v263
    %293 = vmatprep.subr.mxu0 0.0
    %294 = vmatpush1.msra.mxu0 %v264
    %295 = vmatprep.subr.mxu0 0.0
    %296 = vmatpush1.msra.mxu0 %v265
    %297 = vmatprep.subr.mxu0 0.0
    %298 = vmatpush1.msra.mxu0 %v266
    %299 = vmatprep.subr.mxu0 0.0
    %300 = vmatpush1.msra.mxu0 0.0
    %301 = vmatprep.subr.mxu0 0.0
    %302 = vmatpush1.msra.mxu0 0.0
    %303 = vmatprep.subr.mxu0 0.0
    %304 = vmatpush1.msra.mxu0 0.0
    %305 = vmatprep.subr.mxu0 0.0
    %306 = vmatpush1.msra.mxu0 0.0
    %307 = vmatprep.subr.mxu0 0.0
    %308 = vmatpush1.msra.mxu0 0.0
    %309 = vmatprep.subr.mxu0 0.0
    %310 = vmatpush1.msra.mxu0 0.0
    %311 = vmatprep.subr.mxu0 0.0
    %312 = vmatpush1.msra.mxu0 0.0
    %313 = vmatprep.subr.mxu0 0.0
    %314 = vmatpush1.msra.mxu0 0.0
    %315 = vmatprep.subr.mxu0 0.0
    %316 = vmatpush1.msra.mxu0 0.0
    %317 = vmatprep.subr.mxu0 0.0
    %318 = vmatpush1.msra.mxu0 0.0
    %319 = vmatprep.subr.mxu0 0.0
    %320 = vmatpush1.msra.mxu0 0.0
    %321 = vmatprep.subr.mxu0 0.0
    %322 = vmatpush1.msra.mxu0 0.0
    %323 = vmatprep.subr.mxu0 0.0
    %324 = vmatpush1.msra.mxu0 0.0
    %325 = vmatprep.subr.mxu0 0.0
    %326 = vmatpush1.msra.mxu0 0.0
    %327 = vmatprep.subr.mxu0 0.0
    %328 = vmatpush1.msra.mxu0 0.0
    %329 = vmatprep.subr.mxu0 0.0
    %330 = vmatpush1.msra.mxu0 0.0
    %331 = vmatprep.mubr.f32.mxu0 0.0
    %332 = vmatmul.mubr.f32.gmra.mrb[0].mxu0 %v243
    %v333 = vpop.f32.mrb[0].mxu0
    %v334 = vadd.f32 0.0, %v333
    %v335 = vpop.f32.mrb[0].mxu0
    %336 = vmatprep.mubr.f32.mxu0 0.0
    %337 = vmatmul.mubr.f32.gmra.mrb[0].mxu0 %v244
    %v338 = vpop.f32.mrb[0].mxu0
    %v339 = vadd.f32 0.0, %v338
    %v340 = vpop.f32.mrb[0].mxu0
    %341 = vmatprep.mubr.f32.mxu0 0.0
    %342 = vmatmul.mubr.f32.gmra.mrb[0].mxu0 %v245
    %v343 = vpop.f32.mrb[0].mxu0
    %v344 = vadd.f32 0.0, %v343
    %v345 = vpop.f32.mrb[0].mxu0
    %346 = vmatprep.mubr.f32.mxu0 0.0
    %347 = vmatmul.mubr.f32.gmra.mrb[0].mxu0 %v246
    %v348 = vpop.f32.mrb[0].mxu0
    %v349 = vadd.f32 0.0, %v348
    %v350 = vpop.f32.mrb[0].mxu0
    %351 = vmatprep.mubr.f32.mxu0 0.0
    %352 = vmatmul.mubr.f32.gmra.mrb[0].mxu0 %v247
    %v353 = vpop.f32.mrb[0].mxu0
    %v354 = vadd.f32 0.0, %v353
    %v355 = vpop.f32.mrb[0].mxu0
    %356 = vmatprep.mubr.f32.mxu0 0.0
    %357 = vmatmul.mubr.f32.gmra.mrb[0].mxu0 %v248
    %v358 = vpop.f32.mrb[0].mxu0
    %v359 = vadd.f32 0.0, %v358
    %v360 = vpop.f32.mrb[0].mxu0
    %361 = vmatprep.mubr.f32.mxu0 0.0
    %362 = vmatmul.mubr.f32.gmra.mrb[0].mxu0 %v249
    %v363 = vpop.f32.mrb[0].mxu0
    %v364 = vadd.f32 0.0, %v363
    %v365 = vpop.f32.mrb[0].mxu0
    %366 = vmatprep.mubr.f32.mxu0 0.0
    %367 = vmatmul.mubr.f32.gmra.mrb[0].mxu0 %v250
    %v368 = vpop.f32.mrb[0].mxu0
    %v369 = vadd.f32 0.0, %v368
    %v370 = vpop.f32.mrb[0].mxu0
    %371 = vdwg.mxu0
    %v372 = vmul.f32 %v334, 0.25
    %v373 = vmul.f32 %v339, 0.25
    %v374 = vmul.f32 %v344, 0.25
    %v375 = vmul.f32 %v349, 0.25
    %v376 = vmul.f32 %v354, 0.25
    %v377 = vmul.f32 %v359, 0.25
    %v378 = vmul.f32 %v364, 0.25
    %v379 = vmul.f32 %v369, 0.25
    %v380 = vmul.f32 %v243, 0.75
    %v381 = vmul.f32 %v244, 0.75
    %v382 = vmul.f32 %v245, 0.75
    %v383 = vmul.f32 %v246, 0.75
    %v384 = vmul.f32 %v247, 0.75
    %v385 = vmul.f32 %v248, 0.75
    %v386 = vmul.f32 %v249, 0.75
    %v387 = vmul.f32 %v250, 0.75
    %v388 = vadd.f32 %v372, %v380
    %v389 = vadd.f32 %v373, %v381
    %v390 = vadd.f32 %v374, %v382
    %v391 = vadd.f32 %v375, %v383
    %v392 = vadd.f32 %v376, %v384
    %v393 = vadd.f32 %v377, %v385
    %v394 = vadd.f32 %v378, %v386
    %v395 = vadd.f32 %v379, %v387
    %396 = vst [vmem:[#allocation10] sm:$0xff] %v388
    %397 = vst [vmem:[#allocation10 + $0x8] sm:$0xff] %v389
    %398 = vst [vmem:[#allocation10 + $0x10] sm:$0xff] %v390
    %399 = vst [vmem:[#allocation10 + $0x18] sm:$0xff] %v391
    %400 = vst [vmem:[#allocation10 + $0x20] sm:$0xff] %v392
    %401 = vst [vmem:[#allocation10 + $0x28] sm:$0xff] %v393
    %402 = vst [vmem:[#allocation10 + $0x30] sm:$0xff] %v394
    %403 = vst [vmem:[#allocation10 + $0x38] sm:$0xff] %v395
    // Predicated region
    $region34: #{tpu_custom_call.1} parent=1 // pred_check
      _
    $region35: #{tpu_custom_call.1} parent=1 // pred_check_branch
      %405 = sbr.rel (0) target = $region37
    $region36: #{tpu_custom_call.1} parent=1 // pred_region
      %s407 = ssub.s32 1024, 1024
      %408 = vsyncadd [#allocation4], %s407
      %s409 = sshll.u32 [#allocation10], 4
      %s410 = int_to_ptr.vmem [resolvable:$true] %s409
      %415 = dma.vmem_to_hbm [thread:$0]  %s410, 1024, %s4, [#allocation4], 128, 128, 8
    $region37: #{tpu_custom_call.1} parent=1 // pred_fallthru
      _
    // Predicated region
    $region38: #{tpu_custom_call.1} parent=1 // pred_check
      _
    $region39: #{tpu_custom_call.1} parent=1 // pred_check_branch
      %417 = sbr.rel (0) target = $region41
    $region40: #{tpu_custom_call.1} parent=1 // pred_region
      %418 = dma.done [#allocation4], 1024
    $region41: #{tpu_custom_call.1} parent=1 // pred_fallthru
      _
    %419 = vsyncpa [#allocation3], 1
    %420 = vsyncpa [#allocation6], 1
    %421 = vsyncpa [#allocation9], 1
    %422 = vsyncpa [#allocation4], 1

</llo_original>
